<compile_context>
chip_gen: v6e
topology: v6e:2x2x1
jax: 0.10.0
libtpu: 0.0.40
codegen_flags: <defaults>
</compile_context>

<pallas_src>
import math
from functools import partial

import jax
import jax.numpy as jnp
from jax.experimental import pallas as pl
from jax.experimental.pallas import tpu as pltpu


def _whitening_attn_kernel(q_ref, k_ref, v_ref, attn_ref, bias_ref, score_ref, o_ref):
    """Single grid-free step: the whole problem is resident in VMEM.

    Shapes (BH = B*heads):
      q_ref     : (1,  BH, dk)      query, free reshape of (B, hidden)
      k_ref     : (L,  BH, dk)      feed_hiddens, free reshape of (L, B, hidden)
      v_ref     : (L,  BH, dk)      values, same layout
      attn_ref  : (2*dk, hidden)    raw module weight (stacked [Wq; Wk])
      bias_ref  : (1, 1, hidden)    raw module bias
      score_ref : (1, 1, hidden)    raw module score, laid out on lanes
      o_ref     : (BH, dk)          free host reshape to (1, B, hidden)
    """
    L, BH, dk = k_ref.shape
    hidden = attn_ref.shape[1]

    # Fused energy contraction: lane-concat the broadcast query with the keys and hit
    # the stacked [Wq; Wk] weight once (single MXU contraction, K = 2*dk, M = BH).
    q = jnp.broadcast_to(q_ref[...], (L, BH, dk))
    qk = jnp.concatenate([q, k_ref[...]], axis=-1)                         # (L, BH, 2*dk)
    attn_b = jnp.broadcast_to(attn_ref[...][None, :, :], (L, 2 * dk, hidden))
    energy = jnp.einsum("lbd,ldj->lbj", qk, attn_b,
                        preferred_element_type=jnp.float32)                # (L, BH, hidden)
    energy = jnp.maximum(energy + bias_ref[...], 0.0)

    # Per-(b, h, l) attention score: lane reduction against the raw score vector
    # (avoids an N=1 MXU matmul; XLU/VPU have huge slack here).
    s = jnp.sum(energy * score_ref[...], axis=-1, keepdims=True)           # (L, BH, 1)

    # Softmax over the sequence axis (the grid-free leading axis).
    m = jnp.max(s, axis=0, keepdims=True)                                  # (1, BH, 1)
    p = jnp.exp(s - m)
    denom = jnp.sum(p, axis=0, keepdims=True)
    r = pl.reciprocal(denom, approx=True)        # EUP slot (otherwise idle)
    r = r * (2.0 - denom * r)                    # one Newton step -> ~f32 accuracy
    w_attn = p * r                               # (L, BH, 1)

    # out[bh, d] = sum_l w[l, bh] * v[l, bh, d]; tiny epilogue store (one vreg).
    o_ref[...] = jnp.sum(w_attn * v_ref[...], axis=0).astype(o_ref.dtype)  # (BH, dk)


@partial(jax.jit, static_argnames=("heads",))
def whitening_layer_forward(query, feed_hiddens, values, params, heads):
    L, B, hidden = feed_hiddens.shape
    dk = hidden // heads
    BH = B * heads
    f32 = jnp.float32

    # Free (contiguous) reshapes only — no host transposes, no expanded weights.
    q3 = query.astype(f32).reshape(1, BH, dk)
    k3 = feed_hiddens.astype(f32).reshape(L, BH, dk)
    v3 = values.astype(f32).reshape(L, BH, dk)
    attn = params["attn"].astype(f32)                          # (2*dk, hidden), ~2 KiB
    bias = params["bias"].astype(f32).reshape(1, 1, hidden)
    score = params["score"].astype(f32).reshape(1, 1, hidden)

    vmem = pl.BlockSpec(memory_space=pltpu.MemorySpace.VMEM)   # whole array resident, no grid
    out = pl.pallas_call(
        _whitening_attn_kernel,
        out_shape=jax.ShapeDtypeStruct((BH, dk), f32),
        in_specs=[vmem] * 6,
        out_specs=vmem,
    )(q3, k3, v3, attn, bias, score)

    # (B*heads, dk) -> (1, B, hidden)   (matches .view(batch, hidden).unsqueeze(0))
    return out.reshape(1, B, hidden)


def whitening_layer_ref(query, feed_hiddens, values, params, heads):
    """Plain-JAX transcription of the PyTorch forward, for verification."""
    L, B, hidden = feed_hiddens.shape
    dk = hidden // heads
    q = query.reshape(1, B, heads, dk).transpose(1, 2, 0, 3)
    q = jnp.broadcast_to(q, (B, heads, L, dk))
    k = feed_hiddens.reshape(L, B, heads, dk).transpose(1, 2, 0, 3)
    v = values.reshape(L, B, heads, dk).transpose(1, 2, 0, 3)
    energy = jax.nn.relu(
        jnp.concatenate([q, k], axis=-1) @ params["attn"] + params["bias"]
    )
    attn = (energy @ params["score"]).transpose(0, 1, 3, 2)
    attn = jax.nn.softmax(attn, axis=-1)
    out = (attn @ v).reshape(B, hidden)
    return out[None, :, :]


if __name__ == "__main__":
    hidden = 32
    heads = 4
    dk = hidden // heads
    B = 2
    L = 8

    key = jax.random.PRNGKey(0)
    k_bias, k_kernel, k_attn, k_score, k_q, k_h, k_v = jax.random.split(key, 7)
    std = 1.0 / math.sqrt(hidden)

    params = {
        "bias": jax.random.normal(k_bias, (hidden,), jnp.float32) * std,
        # `kernel` is defined in __init__ but never used by forward; kept for fidelity.
        "kernel": jax.random.normal(k_kernel, (hidden, hidden), jnp.float32) * std,
        "attn": jax.random.normal(k_attn, (2 * dk, hidden), jnp.float32) * std,
        "score": jax.random.normal(k_score, (hidden, 1), jnp.float32) * std,
    }

    query = jax.random.normal(k_q, (B, hidden), jnp.float32)
    feed_hiddens = jax.random.normal(k_h, (L, B, hidden), jnp.float32)
    values = jax.random.normal(k_v, (L, B, hidden), jnp.float32)

    out = whitening_layer_forward(query, feed_hiddens, values, params, heads)
    out = jax.block_until_ready(out)

    ref = whitening_layer_ref(query, feed_hiddens, values, params, heads)
    assert out.shape == (1, B, hidden), out.shape
    # 2e-4 tolerance: f32 MXU matmul + approx-reciprocal (+1 Newton step) in the softmax.
    max_err = float(jnp.max(jnp.abs(out - ref)))
    assert jnp.allclose(out, ref, atol=2e-4, rtol=2e-4), max_err

    print("KERNEL_OK")
</pallas_src>

<mosaic_0001>
module attributes {stable_mosaic.version = 11 : i64} {
  func.func @_whitening_attn_kernel(%arg0: memref<1x8x8xf32, #tpu.memory_space<vmem>>, %arg1: memref<8x8x8xf32, #tpu.memory_space<vmem>>, %arg2: memref<8x8x8xf32, #tpu.memory_space<vmem>>, %arg3: memref<16x32xf32, #tpu.memory_space<vmem>>, %arg4: memref<1x1x32xf32, #tpu.memory_space<vmem>>, %arg5: memref<1x1x32xf32, #tpu.memory_space<vmem>>, %arg6: memref<8x8xf32, #tpu.memory_space<vmem>>) attributes {dimension_semantics = [], scalar_prefetch = 0 : i64, scratch_operands = 0 : i64, tpu.core_type = #tpu.core_type<tc>} {
    %c0 = arith.constant 0 : index
    %c0_0 = arith.constant 0 : index
    %c0_1 = arith.constant 0 : index
    %0 = vector.load %arg0[%c0, %c0_0, %c0_1] : memref<1x8x8xf32, #tpu.memory_space<vmem>>, vector<1x8x8xf32>
    %1 = vector.shape_cast %0 : vector<1x8x8xf32> to vector<1x8x8xf32>
    %2 = vector.broadcast %1 : vector<1x8x8xf32> to vector<8x8x8xf32>
    %c0_2 = arith.constant 0 : index
    %c0_3 = arith.constant 0 : index
    %c0_4 = arith.constant 0 : index
    %3 = vector.load %arg1[%c0_2, %c0_3, %c0_4] : memref<8x8x8xf32, #tpu.memory_space<vmem>>, vector<8x8x8xf32>
    %4 = tpu.concatenate %2, %3 in 2 : vector<8x8x8xf32>, vector<8x8x8xf32> -> vector<8x8x16xf32>
    %c0_5 = arith.constant 0 : index
    %c0_6 = arith.constant 0 : index
    %5 = vector.load %arg3[%c0_5, %c0_6] : memref<16x32xf32, #tpu.memory_space<vmem>>, vector<16x32xf32>
    %6 = vector.shape_cast %5 : vector<16x32xf32> to vector<1x16x32xf32>
    %7 = vector.shape_cast %6 : vector<1x16x32xf32> to vector<1x16x32xf32>
    %8 = vector.broadcast %7 : vector<1x16x32xf32> to vector<8x16x32xf32>
    "tpu.trace_start"() <{level = 10 : i32, message = "lbd,ldj->lbj"}> : () -> ()
    %cst = arith.constant dense<0.000000e+00> : vector<8x8x32xf32>
    %9 = tpu.matmul %4, %8, %cst {dimension_numbers = #tpu.dot_dimension_numbers<[2], [1], [1], [2], [0, 0, 0, 1, 1, 2], [0], [0]>} : vector<8x8x16xf32>, vector<8x16x32xf32>, vector<8x8x32xf32> -> vector<8x8x32xf32>
    "tpu.trace_stop"() : () -> ()
    %c0_7 = arith.constant 0 : index
    %c0_8 = arith.constant 0 : index
    %c0_9 = arith.constant 0 : index
    %10 = vector.load %arg4[%c0_7, %c0_8, %c0_9] : memref<1x1x32xf32, #tpu.memory_space<vmem>>, vector<1x1x32xf32>
    %11 = vector.broadcast %10 : vector<1x1x32xf32> to vector<8x8x32xf32>
    %12 = arith.addf %9, %11 : vector<8x8x32xf32>
    %cst_10 = arith.constant 0.000000e+00 : f32
    %13 = vector.broadcast %cst_10 : f32 to vector<8x8x32xf32>
    %14 = arith.maximumf %12, %13 : vector<8x8x32xf32>
    %c0_11 = arith.constant 0 : index
    %c0_12 = arith.constant 0 : index
    %c0_13 = arith.constant 0 : index
    %15 = vector.load %arg5[%c0_11, %c0_12, %c0_13] : memref<1x1x32xf32, #tpu.memory_space<vmem>>, vector<1x1x32xf32>
    %16 = vector.broadcast %15 : vector<1x1x32xf32> to vector<8x8x32xf32>
    %17 = arith.mulf %14, %16 : vector<8x8x32xf32>
    %cst_14 = arith.constant dense<0.000000e+00> : vector<8x8xf32>
    %18 = vector.multi_reduction <add>, %17, %cst_14 [2] : vector<8x8x32xf32> to vector<8x8xf32>
    %19 = vector.shape_cast %18 : vector<8x8xf32> to vector<8x8x1xf32>
    %cst_15 = arith.constant dense<0xFF800000> : vector<8x1xf32>
    %20 = vector.multi_reduction <maximumf>, %19, %cst_15 [0] : vector<8x8x1xf32> to vector<8x1xf32>
    %21 = vector.shape_cast %20 : vector<8x1xf32> to vector<1x8x1xf32>
    %22 = vector.broadcast %21 : vector<1x8x1xf32> to vector<8x8x1xf32>
    %23 = arith.subf %19, %22 : vector<8x8x1xf32>
    %24 = math.exp %23 : vector<8x8x1xf32>
    %cst_16 = arith.constant dense<0.000000e+00> : vector<8x1xf32>
    %25 = vector.multi_reduction <add>, %24, %cst_16 [0] : vector<8x8x1xf32> to vector<8x1xf32>
    %26 = vector.shape_cast %25 : vector<8x1xf32> to vector<1x8x1xf32>
    %27 = tpu.reciprocal %26 {approx = true} : vector<1x8x1xf32> -> vector<1x8x1xf32>
    %28 = arith.mulf %26, %27 : vector<1x8x1xf32>
    %cst_17 = arith.constant 2.000000e+00 : f32
    %29 = vector.broadcast %cst_17 : f32 to vector<1x8x1xf32>
    %30 = arith.subf %29, %28 : vector<1x8x1xf32>
    %31 = arith.mulf %27, %30 : vector<1x8x1xf32>
    %32 = vector.broadcast %31 : vector<1x8x1xf32> to vector<8x8x1xf32>
    %33 = arith.mulf %24, %32 : vector<8x8x1xf32>
    %c0_18 = arith.constant 0 : index
    %c0_19 = arith.constant 0 : index
    %c0_20 = arith.constant 0 : index
    %34 = vector.load %arg2[%c0_18, %c0_19, %c0_20] : memref<8x8x8xf32, #tpu.memory_space<vmem>>, vector<8x8x8xf32>
    %35 = vector.broadcast %33 : vector<8x8x1xf32> to vector<8x8x8xf32>
    %36 = arith.mulf %35, %34 : vector<8x8x8xf32>
    %cst_21 = arith.constant dense<0.000000e+00> : vector<8x8xf32>
    %37 = vector.multi_reduction <add>, %36, %cst_21 [0] : vector<8x8x8xf32> to vector<8x8xf32>
    %c0_22 = arith.constant 0 : index
    %c0_23 = arith.constant 0 : index
    %38 = vector.load %arg6[%c0_22, %c0_23] : memref<8x8xf32, #tpu.memory_space<vmem>>, vector<8x8xf32>
    tpu.vector_store %arg6[%c0_22, %c0_23], %37 {strides = array<i32>} : memref<8x8xf32, #tpu.memory_space<vmem>>, vector<8x8xf32>,
    return
  }
}

</mosaic_0001>

<llo_original>
// kernel: whitening_layer_forward.1
$region0: #{whitening_layer_forward.1}
  #allocation0 [shape = 'u32[]', space=smem, size = 0x4, offset = 0x4, fixed_abs, tag = 'smem constant byte address 0x4 - core index']
  #allocation1 [shape = 'u32[144,128]{1,0:T(1,128)}', space=vmem, size = 0x12000, scoped, tag = 'internal scratch']
  %s0 = inlined_call_operand.vmem [shape: f32[1,8,8], index: 0, kind: input, shape index: {}]
  %s1 = inlined_call_operand.vmem [shape: f32[8,8,8], index: 1, kind: input, shape index: {}]
  %s2 = inlined_call_operand.vmem [shape: f32[8,8,8], index: 2, kind: input, shape index: {}]
  %s3 = inlined_call_operand.vmem [shape: f32[16,32], index: 3, kind: input, shape index: {}]
  %s4 = inlined_call_operand.vmem [shape: f32[1,1,32], index: 4, kind: input, shape index: {}]
  %s5 = inlined_call_operand.vmem [shape: f32[1,1,32], index: 5, kind: input, shape index: {}]
  %s6 = inlined_call_operand.vmem [shape: f32[8,8], index: 6, kind: output, shape index: {}]
  %s7 = sld [smem:[#allocation0]]
  $region34: #{whitening_layer_forward.1} parent=0
    _
  %s9 = ssub.s32 1, %s7
  %s10 = scalar_select 0, %s9, %s7
  // Predicated region
  $region2: #{whitening_layer_forward.1} parent=0 // pred_check
    _
  $region3: #{whitening_layer_forward.1} parent=0 // pred_check_branch
    %12 = sbr.rel (0) target = $region5
  $region4: #{whitening_layer_forward.1} parent=0 // pred_region
    _
  $region5: #{whitening_layer_forward.1} parent=0 // pred_fallthru
    _
  // Predicated region
  $region6: #{whitening_layer_forward.1} parent=0 // pred_check
    _
  $region7: #{whitening_layer_forward.1} parent=0 // pred_check_branch
    %14 = sbr.rel (0) target = $region9
  $region8: #{whitening_layer_forward.1} parent=0 // pred_region
    _
  $region9: #{whitening_layer_forward.1} parent=0 // pred_fallthru
    _
  // Predicated region
  $region10: #{whitening_layer_forward.1} parent=0 // pred_check
    _
  $region11: #{whitening_layer_forward.1} parent=0 // pred_check_branch
    %16 = sbr.rel (0) target = $region13
  $region12: #{whitening_layer_forward.1} parent=0 // pred_region
    _
  $region13: #{whitening_layer_forward.1} parent=0 // pred_fallthru
    _
  // Predicated region
  $region14: #{whitening_layer_forward.1} parent=0 // pred_check
    _
  $region15: #{whitening_layer_forward.1} parent=0 // pred_check_branch
    %18 = sbr.rel (0) target = $region17
  $region16: #{whitening_layer_forward.1} parent=0 // pred_region
    _
  $region17: #{whitening_layer_forward.1} parent=0 // pred_fallthru
    _
  // Predicated region
  $region18: #{whitening_layer_forward.1} parent=0 // pred_check
    _
  $region19: #{whitening_layer_forward.1} parent=0 // pred_check_branch
    %20 = sbr.rel (0) target = $region21
  $region20: #{whitening_layer_forward.1} parent=0 // pred_region
    _
  $region21: #{whitening_layer_forward.1} parent=0 // pred_fallthru
    _
  // Predicated region
  $region22: #{whitening_layer_forward.1} parent=0 // pred_check
    _
  $region23: #{whitening_layer_forward.1} parent=0 // pred_check_branch
    %22 = sbr.rel (0) target = $region25
  $region24: #{whitening_layer_forward.1} parent=0 // pred_region
    _
  $region25: #{whitening_layer_forward.1} parent=0 // pred_fallthru
    _
  %v23 = vld [vmem:[%s0] sm:$0xff]
  %v24 = vld [vmem:[%s1] sm:$0xff]
  %v25 = vld [vmem:[%s1 + $0x8] sm:$0xff]
  %v26 = vld [vmem:[%s1 + $0x10] sm:$0xff]
  %v27 = vld [vmem:[%s1 + $0x18] sm:$0xff]
  %v28 = vld [vmem:[%s1 + $0x20] sm:$0xff]
  %v29 = vld [vmem:[%s1 + $0x28] sm:$0xff]
  %v30 = vld [vmem:[%s1 + $0x30] sm:$0xff]
  %v31 = vld [vmem:[%s1 + $0x38] sm:$0xff]
  %40 = vrot.lane.b32.xlu0 %v24, 8
  %v41 = vpop.permute.xlu0 %40
  %42 = vrot.lane.b32.xlu0 %v25, 8
  %v43 = vpop.permute.xlu0 %42
  %44 = vrot.lane.b32.xlu0 %v26, 8
  %v45 = vpop.permute.xlu0 %44
  %46 = vrot.lane.b32.xlu0 %v27, 8
  %v47 = vpop.permute.xlu0 %46
  %48 = vrot.lane.b32.xlu0 %v28, 8
  %v49 = vpop.permute.xlu0 %48
  %50 = vrot.lane.b32.xlu0 %v29, 8
  %v51 = vpop.permute.xlu0 %50
  %52 = vrot.lane.b32.xlu0 %v30, 8
  %v53 = vpop.permute.xlu0 %52
  %54 = vrot.lane.b32.xlu0 %v31, 8
  %v55 = vpop.permute.xlu0 %54
  %vm64 = vcmask 64512
  %v65 = vsel %vm64, %v23, %v41
  %v66 = vsel %vm64, %v23, %v43
  %v67 = vsel %vm64, %v23, %v45
  %v68 = vsel %vm64, %v23, %v47
  %v69 = vsel %vm64, %v23, %v49
  %v70 = vsel %vm64, %v23, %v51
  %v71 = vsel %vm64, %v23, %v53
  %v72 = vsel %vm64, %v23, %v55
  %v73 = vld [vmem:[%s3] sm:$0xff]
  %v74 = vld [vmem:[%s3 + $0x8] sm:$0xff]
  %v75 = vld [vmem:[%s4] sm:$0x1]
  %v77 = vlaneseq
  %v78 = vshrl.u32 %v77, 7
  %v79 = vsub.s32 0, %v78
  %v80 = vrot.slane %v75, %v79
  %vm82 = vcmask 130048
  %v84 = vsel %vm82, %v65, 0
  %86 = vmatprep.subr.mxu0 0.0
  %87 = vmatpush1.msra.mxu0 0.0
  %88 = vmatprep.subr.mxu0 0.0
  %89 = vmatpush1.msra.mxu0 0.0
  %90 = vmatprep.subr.mxu0 0.0
  %91 = vmatpush1.msra.mxu0 0.0
  %92 = vmatprep.subr.mxu0 0.0
  %93 = vmatpush1.msra.mxu0 0.0
  %94 = vmatprep.subr.mxu0 0.0
  %95 = vmatpush1.msra.mxu0 0.0
  %96 = vmatprep.subr.mxu0 0.0
  %97 = vmatpush1.msra.mxu0 0.0
  %98 = vmatprep.subr.mxu0 0.0
  %99 = vmatpush1.msra.mxu0 0.0
  %100 = vmatprep.subr.mxu0 0.0
  %101 = vmatpush1.msra.mxu0 0.0
  %102 = vmatprep.subr.mxu0 0.0
  %103 = vmatpush1.msra.mxu0 0.0
  %104 = vmatprep.subr.mxu0 0.0
  %105 = vmatpush1.msra.mxu0 0.0
  %106 = vmatprep.subr.mxu0 0.0
  %107 = vmatpush1.msra.mxu0 0.0
  %108 = vmatprep.subr.mxu0 0.0
  %109 = vmatpush1.msra.mxu0 0.0
  %110 = vmatprep.subr.mxu0 0.0
  %111 = vmatpush1.msra.mxu0 0.0
  %112 = vmatprep.subr.mxu0 0.0
  %113 = vmatpush1.msra.mxu0 0.0
  %114 = vmatprep.subr.mxu0 0.0
  %115 = vmatpush1.msra.mxu0 %v74
  %116 = vmatprep.subr.mxu0 0.0
  %117 = vmatpush1.msra.mxu0 %v73
  %118 = vmatprep.subr.mxu0 0.0
  %119 = vmatpush2.msra.mxu0 0.0
  %120 = vmatprep.subr.mxu0 0.0
  %121 = vmatpush2.msra.mxu0 0.0
  %122 = vmatprep.subr.mxu0 0.0
  %123 = vmatpush2.msra.mxu0 0.0
  %124 = vmatprep.subr.mxu0 0.0
  %125 = vmatpush2.msra.mxu0 0.0
  %126 = vmatprep.subr.mxu0 0.0
  %127 = vmatpush2.msra.mxu0 0.0
  %128 = vmatprep.subr.mxu0 0.0
  %129 = vmatpush2.msra.mxu0 0.0
  %130 = vmatprep.subr.mxu0 0.0
  %131 = vmatpush2.msra.mxu0 0.0
  %132 = vmatprep.subr.mxu0 0.0
  %133 = vmatpush2.msra.mxu0 0.0
  %134 = vmatprep.subr.mxu0 0.0
  %135 = vmatpush2.msra.mxu0 0.0
  %136 = vmatprep.subr.mxu0 0.0
  %137 = vmatpush2.msra.mxu0 0.0
  %138 = vmatprep.subr.mxu0 0.0
  %139 = vmatpush2.msra.mxu0 0.0
  %140 = vmatprep.subr.mxu0 0.0
  %141 = vmatpush2.msra.mxu0 0.0
  %142 = vmatprep.subr.mxu0 0.0
  %143 = vmatpush2.msra.mxu0 0.0
  %144 = vmatprep.subr.mxu0 0.0
  %145 = vmatpush2.msra.mxu0 0.0
  %146 = vmatprep.subr.mxu0 0.0
  %147 = vmatpush2.msra.mxu0 0.0
  %148 = vmatprep.subr.mxu0 0.0
  %149 = vmatpush2.msra.mxu0 0.0
  %150 = vmatprep.mubr.f32.mxu0 0.0
  %151 = vmatmul.mubr.f32.gmra.mxu0 %v84
  %v152 = vpop.f32.mrf.mxu0
  %v153 = vadd.f32 %v80, %v152
  %v154 = vpop.f32.mrf.mxu0
  %155 = vdwg.mxu0
  %v157 = vsel %vm82, %v66, 0
  %159 = vmatprep.subr.mxu0 0.0
  %160 = vmatpush1.msra.mxu0 0.0
  %161 = vmatprep.subr.mxu0 0.0
  %162 = vmatpush1.msra.mxu0 0.0
  %163 = vmatprep.subr.mxu0 0.0
  %164 = vmatpush1.msra.mxu0 0.0
  %165 = vmatprep.subr.mxu0 0.0
  %166 = vmatpush1.msra.mxu0 0.0
  %167 = vmatprep.subr.mxu0 0.0
  %168 = vmatpush1.msra.mxu0 0.0
  %169 = vmatprep.subr.mxu0 0.0
  %170 = vmatpush1.msra.mxu0 0.0
  %171 = vmatprep.subr.mxu0 0.0
  %172 = vmatpush1.msra.mxu0 0.0
  %173 = vmatprep.subr.mxu0 0.0
  %174 = vmatpush1.msra.mxu0 0.0
  %175 = vmatprep.subr.mxu0 0.0
  %176 = vmatpush1.msra.mxu0 0.0
  %177 = vmatprep.subr.mxu0 0.0
  %178 = vmatpush1.msra.mxu0 0.0
  %179 = vmatprep.subr.mxu0 0.0
  %180 = vmatpush1.msra.mxu0 0.0
  %181 = vmatprep.subr.mxu0 0.0
  %182 = vmatpush1.msra.mxu0 0.0
  %183 = vmatprep.subr.mxu0 0.0
  %184 = vmatpush1.msra.mxu0 0.0
  %185 = vmatprep.subr.mxu0 0.0
  %186 = vmatpush1.msra.mxu0 0.0
  %187 = vmatprep.subr.mxu0 0.0
  %188 = vmatpush1.msra.mxu0 %v74
  %189 = vmatprep.subr.mxu0 0.0
  %190 = vmatpush1.msra.mxu0 %v73
  %191 = vmatprep.subr.mxu0 0.0
  %192 = vmatpush2.msra.mxu0 0.0
  %193 = vmatprep.subr.mxu0 0.0
  %194 = vmatpush2.msra.mxu0 0.0
  %195 = vmatprep.subr.mxu0 0.0
  %196 = vmatpush2.msra.mxu0 0.0
  %197 = vmatprep.subr.mxu0 0.0
  %198 = vmatpush2.msra.mxu0 0.0
  %199 = vmatprep.subr.mxu0 0.0
  %200 = vmatpush2.msra.mxu0 0.0
  %201 = vmatprep.subr.mxu0 0.0
  %202 = vmatpush2.msra.mxu0 0.0
  %203 = vmatprep.subr.mxu0 0.0
  %204 = vmatpush2.msra.mxu0 0.0
  %205 = vmatprep.subr.mxu0 0.0
  %206 = vmatpush2.msra.mxu0 0.0
  %207 = vmatprep.subr.mxu0 0.0
  %208 = vmatpush2.msra.mxu0 0.0
  %209 = vmatprep.subr.mxu0 0.0
  %210 = vmatpush2.msra.mxu0 0.0
  %211 = vmatprep.subr.mxu0 0.0
  %212 = vmatpush2.msra.mxu0 0.0
  %213 = vmatprep.subr.mxu0 0.0
  %214 = vmatpush2.msra.mxu0 0.0
  %215 = vmatprep.subr.mxu0 0.0
  %216 = vmatpush2.msra.mxu0 0.0
  %217 = vmatprep.subr.mxu0 0.0
  %218 = vmatpush2.msra.mxu0 0.0
  %219 = vmatprep.subr.mxu0 0.0
  %220 = vmatpush2.msra.mxu0 0.0
  %221 = vmatprep.subr.mxu0 0.0
  %222 = vmatpush2.msra.mxu0 0.0
  %223 = vmatprep.mubr.f32.mxu0 0.0
  %224 = vmatmul.mubr.f32.gmra.mxu0 %v157
  %v225 = vpop.f32.mrf.mxu0
  %v226 = vadd.f32 %v80, %v225
  %v227 = vpop.f32.mrf.mxu0
  %228 = vdwg.mxu0
  %v230 = vsel %vm82, %v67, 0
  %232 = vmatprep.subr.mxu0 0.0
  %233 = vmatpush1.msra.mxu0 0.0
  %234 = vmatprep.subr.mxu0 0.0
  %235 = vmatpush1.msra.mxu0 0.0
  %236 = vmatprep.subr.mxu0 0.0
  %237 = vmatpush1.msra.mxu0 0.0
  %238 = vmatprep.subr.mxu0 0.0
  %239 = vmatpush1.msra.mxu0 0.0
  %240 = vmatprep.subr.mxu0 0.0
  %241 = vmatpush1.msra.mxu0 0.0
  %242 = vmatprep.subr.mxu0 0.0
  %243 = vmatpush1.msra.mxu0 0.0
  %244 = vmatprep.subr.mxu0 0.0
  %245 = vmatpush1.msra.mxu0 0.0
  %246 = vmatprep.subr.mxu0 0.0
  %247 = vmatpush1.msra.mxu0 0.0
  %248 = vmatprep.subr.mxu0 0.0
  %249 = vmatpush1.msra.mxu0 0.0
  %250 = vmatprep.subr.mxu0 0.0
  %251 = vmatpush1.msra.mxu0 0.0
  %252 = vmatprep.subr.mxu0 0.0
  %253 = vmatpush1.msra.mxu0 0.0
  %254 = vmatprep.subr.mxu0 0.0
  %255 = vmatpush1.msra.mxu0 0.0
  %256 = vmatprep.subr.mxu0 0.0
  %257 = vmatpush1.msra.mxu0 0.0
  %258 = vmatprep.subr.mxu0 0.0
  %259 = vmatpush1.msra.mxu0 0.0
  %260 = vmatprep.subr.mxu0 0.0
  %261 = vmatpush1.msra.mxu0 %v74
  %262 = vmatprep.subr.mxu0 0.0
  %263 = vmatpush1.msra.mxu0 %v73
  %264 = vmatprep.subr.mxu0 0.0
  %265 = vmatpush2.msra.mxu0 0.0
  %266 = vmatprep.subr.mxu0 0.0
  %267 = vmatpush2.msra.mxu0 0.0
  %268 = vmatprep.subr.mxu0 0.0
  %269 = vmatpush2.msra.mxu0 0.0
  %270 = vmatprep.subr.mxu0 0.0
  %271 = vmatpush2.msra.mxu0 0.0
  %272 = vmatprep.subr.mxu0 0.0
  %273 = vmatpush2.msra.mxu0 0.0
  %274 = vmatprep.subr.mxu0 0.0
  %275 = vmatpush2.msra.mxu0 0.0
  %276 = vmatprep.subr.mxu0 0.0
  %277 = vmatpush2.msra.mxu0 0.0
  %278 = vmatprep.subr.mxu0 0.0
  %279 = vmatpush2.msra.mxu0 0.0
  %280 = vmatprep.subr.mxu0 0.0
  %281 = vmatpush2.msra.mxu0 0.0
  %282 = vmatprep.subr.mxu0 0.0
  %283 = vmatpush2.msra.mxu0 0.0
  %284 = vmatprep.subr.mxu0 0.0
  %285 = vmatpush2.msra.mxu0 0.0
  %286 = vmatprep.subr.mxu0 0.0
  %287 = vmatpush2.msra.mxu0 0.0
  %288 = vmatprep.subr.mxu0 0.0
  %289 = vmatpush2.msra.mxu0 0.0
  %290 = vmatprep.subr.mxu0 0.0
  %291 = vmatpush2.msra.mxu0 0.0
  %292 = vmatprep.subr.mxu0 0.0
  %293 = vmatpush2.msra.mxu0 0.0
  %294 = vmatprep.subr.mxu0 0.0
  %295 = vmatpush2.msra.mxu0 0.0
  %296 = vmatprep.mubr.f32.mxu0 0.0
  %297 = vmatmul.mubr.f32.gmra.mxu0 %v230
  %v298 = vpop.f32.mrf.mxu0
  %v299 = vadd.f32 %v80, %v298
  %v300 = vpop.f32.mrf.mxu0
  %301 = vdwg.mxu0
  %v303 = vsel %vm82, %v68, 0
  %305 = vmatprep.subr.mxu0 0.0
  %306 = vmatpush1.msra.mxu0 0.0
  %307 = vmatprep.subr.mxu0 0.0
  %308 = vmatpush1.msra.mxu0 0.0
  %309 = vmatprep.subr.mxu0 0.0
  %310 = vmatpush1.msra.mxu0 0.0
  %311 = vmatprep.subr.mxu0 0.0
  %312 = vmatpush1.msra.mxu0 0.0
  %313 = vmatprep.subr.mxu0 0.0
  %314 = vmatpush1.msra.mxu0 0.0
  %315 = vmatprep.subr.mxu0 0.0
  %316 = vmatpush1.msra.mxu0 0.0
  %317 = vmatprep.subr.mxu0 0.0
  %318 = vmatpush1.msra.mxu0 0.0
  %319 = vmatprep.subr.mxu0 0.0
  %320 = vmatpush1.msra.mxu0 0.0
  %321 = vmatprep.subr.mxu0 0.0
  %322 = vmatpush1.msra.mxu0 0.0
  %323 = vmatprep.subr.mxu0 0.0
  %324 = vmatpush1.msra.mxu0 0.0
  %325 = vmatprep.subr.mxu0 0.0
  %326 = vmatpush1.msra.mxu0 0.0
  %327 = vmatprep.subr.mxu0 0.0
  %328 = vmatpush1.msra.mxu0 0.0
  %329 = vmatprep.subr.mxu0 0.0
  %330 = vmatpush1.msra.mxu0 0.0
  %331 = vmatprep.subr.mxu0 0.0
  %332 = vmatpush1.msra.mxu0 0.0
  %333 = vmatprep.subr.mxu0 0.0
  %334 = vmatpush1.msra.mxu0 %v74
  %335 = vmatprep.subr.mxu0 0.0
  %336 = vmatpush1.msra.mxu0 %v73
  %337 = vmatprep.subr.mxu0 0.0
  %338 = vmatpush2.msra.mxu0 0.0
  %339 = vmatprep.subr.mxu0 0.0
  %340 = vmatpush2.msra.mxu0 0.0
  %341 = vmatprep.subr.mxu0 0.0
  %342 = vmatpush2.msra.mxu0 0.0
  %343 = vmatprep.subr.mxu0 0.0
  %344 = vmatpush2.msra.mxu0 0.0
  %345 = vmatprep.subr.mxu0 0.0
  %346 = vmatpush2.msra.mxu0 0.0
  %347 = vmatprep.subr.mxu0 0.0
  %348 = vmatpush2.msra.mxu0 0.0
  %349 = vmatprep.subr.mxu0 0.0
  %350 = vmatpush2.msra.mxu0 0.0
  %351 = vmatprep.subr.mxu0 0.0
  %352 = vmatpush2.msra.mxu0 0.0
  %353 = vmatprep.subr.mxu0 0.0
  %354 = vmatpush2.msra.mxu0 0.0
  %355 = vmatprep.subr.mxu0 0.0
  %356 = vmatpush2.msra.mxu0 0.0
  %357 = vmatprep.subr.mxu0 0.0
  %358 = vmatpush2.msra.mxu0 0.0
  %359 = vmatprep.subr.mxu0 0.0
  %360 = vmatpush2.msra.mxu0 0.0
  %361 = vmatprep.subr.mxu0 0.0
  %362 = vmatpush2.msra.mxu0 0.0
  %363 = vmatprep.subr.mxu0 0.0
  %364 = vmatpush2.msra.mxu0 0.0
  %365 = vmatprep.subr.mxu0 0.0
  %366 = vmatpush2.msra.mxu0 0.0
  %367 = vmatprep.subr.mxu0 0.0
  %368 = vmatpush2.msra.mxu0 0.0
  %369 = vmatprep.mubr.f32.mxu0 0.0
  %370 = vmatmul.mubr.f32.gmra.mxu0 %v303
  %v371 = vpop.f32.mrf.mxu0
  %v372 = vadd.f32 %v80, %v371
  %v373 = vpop.f32.mrf.mxu0
  %374 = vdwg.mxu0
  %v376 = vsel %vm82, %v69, 0
  %378 = vmatprep.subr.mxu0 0.0
  %379 = vmatpush1.msra.mxu0 0.0
  %380 = vmatprep.subr.mxu0 0.0
  %381 = vmatpush1.msra.mxu0 0.0
  %382 = vmatprep.subr.mxu0 0.0
  %383 = vmatpush1.msra.mxu0 0.0
  %384 = vmatprep.subr.mxu0 0.0
  %385 = vmatpush1.msra.mxu0 0.0
  %386 = vmatprep.subr.mxu0 0.0
  %387 = vmatpush1.msra.mxu0 0.0
  %388 = vmatprep.subr.mxu0 0.0
  %389 = vmatpush1.msra.mxu0 0.0
  %390 = vmatprep.subr.mxu0 0.0
  %391 = vmatpush1.msra.mxu0 0.0
  %392 = vmatprep.subr.mxu0 0.0
  %393 = vmatpush1.msra.mxu0 0.0
  %394 = vmatprep.subr.mxu0 0.0
  %395 = vmatpush1.msra.mxu0 0.0
  %396 = vmatprep.subr.mxu0 0.0
  %397 = vmatpush1.msra.mxu0 0.0
  %398 = vmatprep.subr.mxu0 0.0
  %399 = vmatpush1.msra.mxu0 0.0
  %400 = vmatprep.subr.mxu0 0.0
  %401 = vmatpush1.msra.mxu0 0.0
  %402 = vmatprep.subr.mxu0 0.0
  %403 = vmatpush1.msra.mxu0 0.0
  %404 = vmatprep.subr.mxu0 0.0
  %405 = vmatpush1.msra.mxu0 0.0
  %406 = vmatprep.subr.mxu0 0.0
  %407 = vmatpush1.msra.mxu0 %v74
  %408 = vmatprep.subr.mxu0 0.0
  %409 = vmatpush1.msra.mxu0 %v73
  %410 = vmatprep.subr.mxu0 0.0
  %411 = vmatpush2.msra.mxu0 0.0
  %412 = vmatprep.subr.mxu0 0.0
  %413 = vmatpush2.msra.mxu0 0.0
  %414 = vmatprep.subr.mxu0 0.0
  %415 = vmatpush2.msra.mxu0 0.0
  %416 = vmatprep.subr.mxu0 0.0
  %417 = vmatpush2.msra.mxu0 0.0
  %418 = vmatprep.subr.mxu0 0.0
  %419 = vmatpush2.msra.mxu0 0.0
  %420 = vmatprep.subr.mxu0 0.0
  %421 = vmatpush2.msra.mxu0 0.0
  %422 = vmatprep.subr.mxu0 0.0
  %423 = vmatpush2.msra.mxu0 0.0
  %424 = vmatprep.subr.mxu0 0.0
  %425 = vmatpush2.msra.mxu0 0.0
  %426 = vmatprep.subr.mxu0 0.0
  %427 = vmatpush2.msra.mxu0 0.0
  %428 = vmatprep.subr.mxu0 0.0
  %429 = vmatpush2.msra.mxu0 0.0
  %430 = vmatprep.subr.mxu0 0.0
  %431 = vmatpush2.msra.mxu0 0.0
  %432 = vmatprep.subr.mxu0 0.0
  %433 = vmatpush2.msra.mxu0 0.0
  %434 = vmatprep.subr.mxu0 0.0
  %435 = vmatpush2.msra.mxu0 0.0
  %436 = vmatprep.subr.mxu0 0.0
  %437 = vmatpush2.msra.mxu0 0.0
  %438 = vmatprep.subr.mxu0 0.0
  %439 = vmatpush2.msra.mxu0 0.0
  %440 = vmatprep.subr.mxu0 0.0
  %441 = vmatpush2.msra.mxu0 0.0
  %442 = vmatprep.mubr.f32.mxu0 0.0
  %443 = vmatmul.mubr.f32.gmra.mxu0 %v376
  %v444 = vpop.f32.mrf.mxu0
  %v445 = vadd.f32 %v80, %v444
  %v446 = vpop.f32.mrf.mxu0
  %447 = vdwg.mxu0
  %v449 = vsel %vm82, %v70, 0
  %451 = vmatprep.subr.mxu0 0.0
  %452 = vmatpush1.msra.mxu0 0.0
  %453 = vmatprep.subr.mxu0 0.0
  %454 = vmatpush1.msra.mxu0 0.0
  %455 = vmatprep.subr.mxu0 0.0
  %456 = vmatpush1.msra.mxu0 0.0
  %457 = vmatprep.subr.mxu0 0.0
  %458 = vmatpush1.msra.mxu0 0.0
  %459 = vmatprep.subr.mxu0 0.0
  %460 = vmatpush1.msra.mxu0 0.0
  %461 = vmatprep.subr.mxu0 0.0
  %462 = vmatpush1.msra.mxu0 0.0
  %463 = vmatprep.subr.mxu0 0.0
  %464 = vmatpush1.msra.mxu0 0.0
  %465 = vmatprep.subr.mxu0 0.0
  %466 = vmatpush1.msra.mxu0 0.0
  %467 = vmatprep.subr.mxu0 0.0
  %468 = vmatpush1.msra.mxu0 0.0
  %469 = vmatprep.subr.mxu0 0.0
  %470 = vmatpush1.msra.mxu0 0.0
  %471 = vmatprep.subr.mxu0 0.0
  %472 = vmatpush1.msra.mxu0 0.0
  %473 = vmatprep.subr.mxu0 0.0
  %474 = vmatpush1.msra.mxu0 0.0
  %475 = vmatprep.subr.mxu0 0.0
  %476 = vmatpush1.msra.mxu0 0.0
  %477 = vmatprep.subr.mxu0 0.0
  %478 = vmatpush1.msra.mxu0 0.0
  %479 = vmatprep.subr.mxu0 0.0
  %480 = vmatpush1.msra.mxu0 %v74
  %481 = vmatprep.subr.mxu0 0.0
  %482 = vmatpush1.msra.mxu0 %v73
  %483 = vmatprep.subr.mxu0 0.0
  %484 = vmatpush2.msra.mxu0 0.0
  %485 = vmatprep.subr.mxu0 0.0
  %486 = vmatpush2.msra.mxu0 0.0
  %487 = vmatprep.subr.mxu0 0.0
  %488 = vmatpush2.msra.mxu0 0.0
  %489 = vmatprep.subr.mxu0 0.0
  %490 = vmatpush2.msra.mxu0 0.0
  %491 = vmatprep.subr.mxu0 0.0
  %492 = vmatpush2.msra.mxu0 0.0
  %493 = vmatprep.subr.mxu0 0.0
  %494 = vmatpush2.msra.mxu0 0.0
  %495 = vmatprep.subr.mxu0 0.0
  %496 = vmatpush2.msra.mxu0 0.0
  %497 = vmatprep.subr.mxu0 0.0
  %498 = vmatpush2.msra.mxu0 0.0
  %499 = vmatprep.subr.mxu0 0.0
  %500 = vmatpush2.msra.mxu0 0.0
  %501 = vmatprep.subr.mxu0 0.0
  %502 = vmatpush2.msra.mxu0 0.0
  %503 = vmatprep.subr.mxu0 0.0
  %504 = vmatpush2.msra.mxu0 0.0
  %505 = vmatprep.subr.mxu0 0.0
  %506 = vmatpush2.msra.mxu0 0.0
  %507 = vmatprep.subr.mxu0 0.0
  %508 = vmatpush2.msra.mxu0 0.0
  %509 = vmatprep.subr.mxu0 0.0
  %510 = vmatpush2.msra.mxu0 0.0
  %511 = vmatprep.subr.mxu0 0.0
  %512 = vmatpush2.msra.mxu0 0.0
  %513 = vmatprep.subr.mxu0 0.0
  %514 = vmatpush2.msra.mxu0 0.0
  %515 = vmatprep.mubr.f32.mxu0 0.0
  %516 = vmatmul.mubr.f32.gmra.mxu0 %v449
  %v517 = vpop.f32.mrf.mxu0
  %v518 = vadd.f32 %v80, %v517
  %v519 = vpop.f32.mrf.mxu0
  %520 = vdwg.mxu0
  %v522 = vsel %vm82, %v71, 0
  %524 = vmatprep.subr.mxu0 0.0
  %525 = vmatpush1.msra.mxu0 0.0
  %526 = vmatprep.subr.mxu0 0.0
  %527 = vmatpush1.msra.mxu0 0.0
  %528 = vmatprep.subr.mxu0 0.0
  %529 = vmatpush1.msra.mxu0 0.0
  %530 = vmatprep.subr.mxu0 0.0
  %531 = vmatpush1.msra.mxu0 0.0
  %532 = vmatprep.subr.mxu0 0.0
  %533 = vmatpush1.msra.mxu0 0.0
  %534 = vmatprep.subr.mxu0 0.0
  %535 = vmatpush1.msra.mxu0 0.0
  %536 = vmatprep.subr.mxu0 0.0
  %537 = vmatpush1.msra.mxu0 0.0
  %538 = vmatprep.subr.mxu0 0.0
  %539 = vmatpush1.msra.mxu0 0.0
  %540 = vmatprep.subr.mxu0 0.0
  %541 = vmatpush1.msra.mxu0 0.0
  %542 = vmatprep.subr.mxu0 0.0
  %543 = vmatpush1.msra.mxu0 0.0
  %544 = vmatprep.subr.mxu0 0.0
  %545 = vmatpush1.msra.mxu0 0.0
  %546 = vmatprep.subr.mxu0 0.0
  %547 = vmatpush1.msra.mxu0 0.0
  %548 = vmatprep.subr.mxu0 0.0
  %549 = vmatpush1.msra.mxu0 0.0
  %550 = vmatprep.subr.mxu0 0.0
  %551 = vmatpush1.msra.mxu0 0.0
  %552 = vmatprep.subr.mxu0 0.0
  %553 = vmatpush1.msra.mxu0 %v74
  %554 = vmatprep.subr.mxu0 0.0
  %555 = vmatpush1.msra.mxu0 %v73
  %556 = vmatprep.subr.mxu0 0.0
  %557 = vmatpush2.msra.mxu0 0.0
  %558 = vmatprep.subr.mxu0 0.0
  %559 = vmatpush2.msra.mxu0 0.0
  %560 = vmatprep.subr.mxu0 0.0
  %561 = vmatpush2.msra.mxu0 0.0
  %562 = vmatprep.subr.mxu0 0.0
  %563 = vmatpush2.msra.mxu0 0.0
  %564 = vmatprep.subr.mxu0 0.0
  %565 = vmatpush2.msra.mxu0 0.0
  %566 = vmatprep.subr.mxu0 0.0
  %567 = vmatpush2.msra.mxu0 0.0
  %568 = vmatprep.subr.mxu0 0.0
  %569 = vmatpush2.msra.mxu0 0.0
  %570 = vmatprep.subr.mxu0 0.0
  %571 = vmatpush2.msra.mxu0 0.0
  %572 = vmatprep.subr.mxu0 0.0
  %573 = vmatpush2.msra.mxu0 0.0
  %574 = vmatprep.subr.mxu0 0.0
  %575 = vmatpush2.msra.mxu0 0.0
  %576 = vmatprep.subr.mxu0 0.0
  %577 = vmatpush2.msra.mxu0 0.0
  %578 = vmatprep.subr.mxu0 0.0
  %579 = vmatpush2.msra.mxu0 0.0
  %580 = vmatprep.subr.mxu0 0.0
  %581 = vmatpush2.msra.mxu0 0.0
  %582 = vmatprep.subr.mxu0 0.0
  %583 = vmatpush2.msra.mxu0 0.0
  %584 = vmatprep.subr.mxu0 0.0
  %585 = vmatpush2.msra.mxu0 0.0
  %586 = vmatprep.subr.mxu0 0.0
  %587 = vmatpush2.msra.mxu0 0.0
  %588 = vmatprep.mubr.f32.mxu0 0.0
  %589 = vmatmul.mubr.f32.gmra.mxu0 %v522
  %v590 = vpop.f32.mrf.mxu0
  %v591 = vadd.f32 %v80, %v590
  %v592 = vpop.f32.mrf.mxu0
  %593 = vdwg.mxu0
  %v595 = vsel %vm82, %v72, 0
  %597 = vmatprep.subr.mxu0 0.0
  %598 = vmatpush1.msra.mxu0 0.0
  %599 = vmatprep.subr.mxu0 0.0
  %600 = vmatpush1.msra.mxu0 0.0
  %601 = vmatprep.subr.mxu0 0.0
  %602 = vmatpush1.msra.mxu0 0.0
  %603 = vmatprep.subr.mxu0 0.0
  %604 = vmatpush1.msra.mxu0 0.0
  %605 = vmatprep.subr.mxu0 0.0
  %606 = vmatpush1.msra.mxu0 0.0
  %607 = vmatprep.subr.mxu0 0.0
  %608 = vmatpush1.msra.mxu0 0.0
  %609 = vmatprep.subr.mxu0 0.0
  %610 = vmatpush1.msra.mxu0 0.0
  %611 = vmatprep.subr.mxu0 0.0
  %612 = vmatpush1.msra.mxu0 0.0
  %613 = vmatprep.subr.mxu0 0.0
  %614 = vmatpush1.msra.mxu0 0.0
  %615 = vmatprep.subr.mxu0 0.0
  %616 = vmatpush1.msra.mxu0 0.0
  %617 = vmatprep.subr.mxu0 0.0
  %618 = vmatpush1.msra.mxu0 0.0
  %619 = vmatprep.subr.mxu0 0.0
  %620 = vmatpush1.msra.mxu0 0.0
  %621 = vmatprep.subr.mxu0 0.0
  %622 = vmatpush1.msra.mxu0 0.0
  %623 = vmatprep.subr.mxu0 0.0
  %624 = vmatpush1.msra.mxu0 0.0
  %625 = vmatprep.subr.mxu0 0.0
  %626 = vmatpush1.msra.mxu0 %v74
  %627 = vmatprep.subr.mxu0 0.0
  %628 = vmatpush1.msra.mxu0 %v73
  %629 = vmatprep.subr.mxu0 0.0
  %630 = vmatpush2.msra.mxu0 0.0
  %631 = vmatprep.subr.mxu0 0.0
  %632 = vmatpush2.msra.mxu0 0.0
  %633 = vmatprep.subr.mxu0 0.0
  %634 = vmatpush2.msra.mxu0 0.0
  %635 = vmatprep.subr.mxu0 0.0
  %636 = vmatpush2.msra.mxu0 0.0
  %637 = vmatprep.subr.mxu0 0.0
  %638 = vmatpush2.msra.mxu0 0.0
  %639 = vmatprep.subr.mxu0 0.0
  %640 = vmatpush2.msra.mxu0 0.0
  %641 = vmatprep.subr.mxu0 0.0
  %642 = vmatpush2.msra.mxu0 0.0
  %643 = vmatprep.subr.mxu0 0.0
  %644 = vmatpush2.msra.mxu0 0.0
  %645 = vmatprep.subr.mxu0 0.0
  %646 = vmatpush2.msra.mxu0 0.0
  %647 = vmatprep.subr.mxu0 0.0
  %648 = vmatpush2.msra.mxu0 0.0
  %649 = vmatprep.subr.mxu0 0.0
  %650 = vmatpush2.msra.mxu0 0.0
  %651 = vmatprep.subr.mxu0 0.0
  %652 = vmatpush2.msra.mxu0 0.0
  %653 = vmatprep.subr.mxu0 0.0
  %654 = vmatpush2.msra.mxu0 0.0
  %655 = vmatprep.subr.mxu0 0.0
  %656 = vmatpush2.msra.mxu0 0.0
  %657 = vmatprep.subr.mxu0 0.0
  %658 = vmatpush2.msra.mxu0 0.0
  %659 = vmatprep.subr.mxu0 0.0
  %660 = vmatpush2.msra.mxu0 0.0
  %661 = vmatprep.mubr.f32.mxu0 0.0
  %662 = vmatmul.mubr.f32.gmra.mxu0 %v595
  %v663 = vpop.f32.mrf.mxu0
  %v664 = vadd.f32 %v80, %v663
  %v665 = vpop.f32.mrf.mxu0
  %666 = vdwg.mxu0
  %v667 = vmax.f32 %v153, 0.0
  %v668 = vmax.f32 %v226, 0.0
  %v669 = vmax.f32 %v299, 0.0
  %v670 = vmax.f32 %v372, 0.0
  %v671 = vmax.f32 %v445, 0.0
  %v672 = vmax.f32 %v518, 0.0
  %v673 = vmax.f32 %v591, 0.0
  %v674 = vmax.f32 %v664, 0.0
  %v675 = vld [vmem:[%s5] sm:$0x1]
  %v677 = vlaneseq
  %v678 = vshrl.u32 %v677, 7
  %v679 = vsub.s32 0, %v678
  %v680 = vrot.slane %v675, %v679
  %v682 = vmul.f32 %v667, %v680
  %v683 = vmul.f32 %v668, %v680
  %v684 = vmul.f32 %v669, %v680
  %v685 = vmul.f32 %v670, %v680
  %v686 = vmul.f32 %v671, %v680
  %v687 = vmul.f32 %v672, %v680
  %v688 = vmul.f32 %v673, %v680
  %v689 = vmul.f32 %v674, %v680
  %vm690 = vcmask 261120
  %v691 = vsel %vm690, %v682, 0.0
  %692 = vadd.xlane.f32.xlu0 %v691
  %v693 = vpop.xlane.xlu0 %692
  %v694 = vsel %vm690, %v683, 0.0
  %695 = vadd.xlane.f32.xlu0 %v694
  %v696 = vpop.xlane.xlu0 %695
  %v697 = vsel %vm690, %v684, 0.0
  %698 = vadd.xlane.f32.xlu0 %v697
  %v699 = vpop.xlane.xlu0 %698
  %v700 = vsel %vm690, %v685, 0.0
  %701 = vadd.xlane.f32.xlu0 %v700
  %v702 = vpop.xlane.xlu0 %701
  %v703 = vsel %vm690, %v686, 0.0
  %704 = vadd.xlane.f32.xlu0 %v703
  %v705 = vpop.xlane.xlu0 %704
  %v706 = vsel %vm690, %v687, 0.0
  %707 = vadd.xlane.f32.xlu0 %v706
  %v708 = vpop.xlane.xlu0 %707
  %v709 = vsel %vm690, %v688, 0.0
  %710 = vadd.xlane.f32.xlu0 %v709
  %v711 = vpop.xlane.xlu0 %710
  %v712 = vsel %vm690, %v689, 0.0
  %713 = vadd.xlane.f32.xlu0 %v712
  %v714 = vpop.xlane.xlu0 %713
  %v715 = vmax.f32 %v693, %v705
  %v716 = vmax.f32 %v696, %v708
  %v717 = vmax.f32 %v699, %v711
  %v718 = vmax.f32 %v702, %v714
  %v719 = vmax.f32 %v715, %v716
  %v720 = vmax.f32 %v717, %v718
  %v721 = vmax.f32 %v719, %v720
  %v722 = vsub.f32 %v693, %v721
  %v723 = vsub.f32 %v696, %v721
  %v724 = vsub.f32 %v699, %v721
  %v725 = vsub.f32 %v702, %v721
  %v726 = vsub.f32 %v705, %v721
  %v727 = vsub.f32 %v708, %v721
  %v728 = vsub.f32 %v711, %v721
  %v729 = vsub.f32 %v714, %v721
  %v730 = vmul.f32 %v722, 1.442695
  %v731 = vpow.pop %v730
  %v732 = vmul.f32 %v723, 1.442695
  %v733 = vpow.pop %v732
  %v734 = vmul.f32 %v724, 1.442695
  %v735 = vpow.pop %v734
  %v736 = vmul.f32 %v725, 1.442695
  %v737 = vpow.pop %v736
  %v738 = vmul.f32 %v726, 1.442695
  %v739 = vpow.pop %v738
  %v740 = vmul.f32 %v727, 1.442695
  %v741 = vpow.pop %v740
  %v742 = vmul.f32 %v728, 1.442695
  %v743 = vpow.pop %v742
  %v744 = vmul.f32 %v729, 1.442695
  %v745 = vpow.pop %v744
  %v746 = vadd.f32 %v731, %v733
  %v747 = vadd.f32 %v746, %v735
  %v748 = vadd.f32 %v747, %v737
  %v749 = vadd.f32 %v748, %v739
  %v750 = vadd.f32 %v749, %v741
  %v751 = vadd.f32 %v750, %v743
  %v752 = vadd.f32 %v751, %v745
  %v753 = vrcp.pop %v752
  %v754 = vmul.f32 %v752, %v753
  %v755 = vsub.f32 2.0, %v754
  %v756 = vmul.f32 %v753, %v755
  %v757 = vmul.f32 %v731, %v756
  %v758 = vmul.f32 %v733, %v756
  %v759 = vmul.f32 %v735, %v756
  %v760 = vmul.f32 %v737, %v756
  %v761 = vmul.f32 %v739, %v756
  %v762 = vmul.f32 %v741, %v756
  %v763 = vmul.f32 %v743, %v756
  %v764 = vmul.f32 %v745, %v756
  %v765 = vld [vmem:[%s2] sm:$0xff]
  %v766 = vld [vmem:[%s2 + $0x8] sm:$0xff]
  %v767 = vld [vmem:[%s2 + $0x10] sm:$0xff]
  %v768 = vld [vmem:[%s2 + $0x18] sm:$0xff]
  %v769 = vld [vmem:[%s2 + $0x20] sm:$0xff]
  %v770 = vld [vmem:[%s2 + $0x28] sm:$0xff]
  %v771 = vld [vmem:[%s2 + $0x30] sm:$0xff]
  %v772 = vld [vmem:[%s2 + $0x38] sm:$0xff]
  %v773 = vmul.f32 %v757, %v765
  %v774 = vmul.f32 %v758, %v766
  %v775 = vmul.f32 %v759, %v767
  %v776 = vmul.f32 %v760, %v768
  %v777 = vmul.f32 %v761, %v769
  %v778 = vmul.f32 %v762, %v770
  %v779 = vmul.f32 %v763, %v771
  %v780 = vmul.f32 %v764, %v772
  %v781 = vsel %vm64, %v773, 0.0
  %v782 = vsel %vm64, %v774, 0.0
  %v783 = vadd.f32 %v781, %v782
  %v784 = vsel %vm64, %v775, 0.0
  %v785 = vadd.f32 %v783, %v784
  %v786 = vsel %vm64, %v776, 0.0
  %v787 = vadd.f32 %v785, %v786
  %v788 = vsel %vm64, %v777, 0.0
  %v789 = vadd.f32 %v787, %v788
  %v790 = vsel %vm64, %v778, 0.0
  %v791 = vadd.f32 %v789, %v790
  %v792 = vsel %vm64, %v779, 0.0
  %v793 = vadd.f32 %v791, %v792
  %v794 = vsel %vm64, %v780, 0.0
  %v795 = vadd.f32 %v793, %v794
  %796 = vst.msk [vmem:[%s6] sm:$0xff] %vm64, %v795
  // Predicated region
  $region26: #{whitening_layer_forward.1} parent=0 // pred_check
    _
  $region27: #{whitening_layer_forward.1} parent=0 // pred_check_branch
    %798 = sbr.rel (0) target = $region29
  $region28: #{whitening_layer_forward.1} parent=0 // pred_region
    _
  $region29: #{whitening_layer_forward.1} parent=0 // pred_fallthru
    _
  // Predicated region
  $region30: #{whitening_layer_forward.1} parent=0 // pred_check
    _
  $region31: #{whitening_layer_forward.1} parent=0 // pred_check_branch
    %800 = sbr.rel (0) target = $region33
  $region32: #{whitening_layer_forward.1} parent=0 // pred_region
    _
  $region33: #{whitening_layer_forward.1} parent=0 // pred_fallthru
    _

</llo_original>
